<compile_context>
chip_gen: v7x
topology: tpu7x:2x2x1
jax: 0.10.0
libtpu: 0.0.40
codegen_flags: <defaults>
</compile_context>

<pallas_src>
import math
import functools

import jax
import jax.numpy as jnp
from jax import lax
from jax.experimental import pallas as pl
from jax.experimental.pallas import tpu as pltpu


def _round_up(a, b):
    return (a + b - 1) // b * b


def _attention_kernel(x_ref, wq_ref, wk_ref, o_ref, ks_ref, *,
                      scale, tq, hw_keys, hw_valid):
    """One (batch, head, q_tile) grid step.

    x_ref  : (1, HW_q, C)     bf16  all (padded) pixels of this batch item
    wq_ref : (1, D, C)        bf16  q-projection weight of this head
    wk_ref : (1, D, C)        bf16  k-projection weight of this head
    o_ref  : (1, 1, TQ, HW_k) f32   attention rows for this q-tile
    ks_ref : (HW_k, D)        bf16  scratch: projected keys, reused over tiles
    """
    qi = pl.program_id(2)

    # Project all keys once per (batch, head). The VMEM scratch persists
    # across the innermost ("arbitrary") q-tile axis.
    @pl.when(qi == 0)
    def _():
        xk = x_ref[0, :hw_keys, :]                                   # (HW_k, C)
        k = lax.dot_general(xk, wk_ref[0], (((1,), (1,)), ((), ())),
                            preferred_element_type=jnp.float32)      # (HW_k, D)
        ks_ref[...] = k.astype(ks_ref.dtype)

    # Project this tile's queries; scale on q (O(TQ*D)) not on sim (O(TQ*HW)).
    q_start = pl.multiple_of(qi * tq, tq)
    xq = x_ref[0, pl.ds(q_start, tq), :]                             # (TQ, C)
    q = lax.dot_general(xq, wq_ref[0], (((1,), (1,)), ((), ())),
                        preferred_element_type=jnp.float32)
    q = (q * scale).astype(jnp.bfloat16)                             # (TQ, D)

    # Similarity tile: contract last dims directly (no materialized .T).
    sim = lax.dot_general(q, ks_ref[...], (((1,), (1,)), ((), ())),
                          preferred_element_type=jnp.float32)        # (TQ, HW_k)

    if hw_valid < hw_keys:  # static check: mask padded key columns
        col = lax.broadcasted_iota(jnp.int32, sim.shape, 1)
        sim = jnp.where(col < hw_valid, sim, jnp.float32(-1e30))

    # Row softmax over the full (padded + masked) key axis.
    m = jnp.max(sim, axis=-1, keepdims=True)
    p = jnp.exp(sim - m)
    denom = jnp.sum(p, axis=-1, keepdims=True)
    attn = p * pl.reciprocal(denom, approx=True)

    o_ref[0, 0] = attn.astype(o_ref.dtype)


def gma_attention(fmap_nchw, w_qk, *, heads, dim_head, tq=None):
    """fmap_nchw: (B, C, H, W) float32.  w_qk: (2*heads*dim_head, C) 1x1-conv weight.

    Returns attn of shape (B, heads, H*W, H*W) float32 (matches the PyTorch module).
    """
    B, C, H, W = fmap_nchw.shape
    HW = H * W
    inner = heads * dim_head
    assert w_qk.shape == (2 * inner, C)

    if tq is None:
        # v7x has half the VMEM of v5e/v6e (64 vs 128 MiB): keep the f32
        # (TQ, HW_k) output tile (double-buffered) modest on every generation.
        tq = 128 if HW <= 1024 else 256
    assert tq % 128 == 0

    hw_k = _round_up(HW, 128)   # key axis: lane-dense output stores
    hw_q = _round_up(HW, tq)    # query axis: multiple of the q-tile (>= hw_k)
    n_q_tiles = hw_q // tq

    # Glue: NCHW -> (B, HW, C), pad pixel axis, cast to bf16 (halves input DMA).
    x = jnp.transpose(fmap_nchw, (0, 2, 3, 1)).reshape(B, HW, C)
    if hw_q > HW:
        x = jnp.pad(x, ((0, 0), (0, hw_q - HW), (0, 0)))
    x = x.astype(jnp.bfloat16)

    w = w_qk.astype(jnp.bfloat16)
    wq = w[:inner].reshape(heads, dim_head, C)
    wk = w[inner:].reshape(heads, dim_head, C)

    scale = float(dim_head) ** (-0.5)
    kernel = functools.partial(
        _attention_kernel, scale=scale, tq=tq, hw_keys=hw_k, hw_valid=HW)

    out = pl.pallas_call(
        kernel,
        out_shape=jax.ShapeDtypeStruct((B, heads, hw_q, hw_k), jnp.float32),
        grid_spec=pltpu.PrefetchScalarGridSpec(
            num_scalar_prefetch=0,
            grid=(B, heads, n_q_tiles),
            in_specs=[
                # All (padded) pixels of this batch item: re-DMA'd only when
                # the batch index changes (same block across heads / q-tiles).
                pl.BlockSpec((1, hw_q, C), lambda bi, hi, qi: (bi, 0, 0)),
                pl.BlockSpec((1, dim_head, C), lambda bi, hi, qi: (hi, 0, 0)),
                pl.BlockSpec((1, dim_head, C), lambda bi, hi, qi: (hi, 0, 0)),
            ],
            out_specs=pl.BlockSpec((1, 1, tq, hw_k),
                                   lambda bi, hi, qi: (bi, hi, qi, 0)),
            scratch_shapes=[pltpu.VMEM((hw_k, dim_head), jnp.bfloat16)],
        ),
        compiler_params=pltpu.CompilerParams(
            dimension_semantics=("parallel", "parallel", "arbitrary"),
            vmem_limit_bytes=48 * 1024 * 1024,
        ),
    )(x, wq, wk)

    # Drop query/key padding.  TODO(synk): at realistic GMA shapes, fuse the
    # downstream aggregate (attn @ value) flash-attention style so the HW x HW
    # matrix never reaches HBM; here we keep the module's exact output.
    return out[:, :, :HW, :HW]


def _reference(fmap_nchw, w_qk, *, heads, dim_head):
    """Pure-JAX f32 reference mirroring the PyTorch module."""
    B, C, H, W = fmap_nchw.shape
    inner = heads * dim_head
    qk = jnp.einsum('bchw,oc->bohw', fmap_nchw, w_qk)
    q, k = qk[:, :inner], qk[:, inner:]
    q = q.reshape(B, heads, dim_head, H, W).transpose(0, 1, 3, 4, 2)
    k = k.reshape(B, heads, dim_head, H, W).transpose(0, 1, 3, 4, 2)
    q = q * (dim_head ** (-0.5))
    sim = jnp.einsum('bhxyd,bhuvd->bhxyuv', q, k)
    sim = sim.reshape(B, heads, H * W, H * W)
    return jax.nn.softmax(sim, axis=-1)


if __name__ == "__main__":
    # Small shapes consistent with the module: B=2, dim=32, H=W=8, heads=4, dim_head=32.
    B, C, H, W = 2, 32, 8, 8
    heads, dim_head = 4, 32
    inner = heads * dim_head

    key = jax.random.PRNGKey(0)
    k_x, k_w = jax.random.split(key)
    fmap = jax.random.normal(k_x, (B, C, H, W), dtype=jnp.float32)
    # Conv2d(dim, 2*inner, 1, bias=False)-style kaiming-uniform init.
    bound = 1.0 / math.sqrt(C)
    w_qk = jax.random.uniform(
        k_w, (2 * inner, C), dtype=jnp.float32, minval=-bound, maxval=bound
    )

    attn = gma_attention(fmap, w_qk, heads=heads, dim_head=dim_head)
    attn = jax.block_until_ready(attn)

    ref = _reference(fmap, w_qk, heads=heads, dim_head=dim_head)
    assert attn.shape == (B, heads, H * W, H * W)
    # bf16 MXU inputs -> loosened tolerance vs the f32 reference.
    assert jnp.allclose(attn, ref, atol=1e-2, rtol=1e-2), "mismatch vs reference"
    # Rows of a softmax must sum to ~1.
    assert jnp.allclose(jnp.sum(attn, axis=-1), 1.0, atol=5e-3)

    print("KERNEL_OK")
</pallas_src>

<mosaic_0001>
module attributes {stable_mosaic.version = 11 : i64} {
  func.func @_attention_kernel(%arg0: i32, %arg1: i32, %arg2: i32, %arg3: memref<1x128x32xbf16, #tpu.memory_space<vmem>>, %arg4: memref<1x32x32xbf16, #tpu.memory_space<vmem>>, %arg5: memref<1x32x32xbf16, #tpu.memory_space<vmem>>, %arg6: memref<1x1x128x128xf32, #tpu.memory_space<vmem>>, %arg7: memref<128x32xbf16, #tpu.memory_space<vmem>>) attributes {dimension_semantics = [#tpu.dimension_semantics<parallel>, #tpu.dimension_semantics<parallel>, #tpu.dimension_semantics<arbitrary>], iteration_bounds = array<i64: 2, 4, 1>, scalar_prefetch = 0 : i64, scratch_operands = 1 : i64, tpu.core_type = #tpu.core_type<tc>, window_params = [{transform_indices = @transform_0, window_bounds = array<i64: 1, 128, 32>}, {transform_indices = @transform_1, window_bounds = array<i64: 1, 32, 32>}, {transform_indices = @transform_2, window_bounds = array<i64: 1, 32, 32>}, {transform_indices = @transform_3, window_bounds = array<i64: 1, 1, 128, 128>}]} {
    %c0_i32 = arith.constant 0 : i32
    %0 = arith.cmpi eq, %arg2, %c0_i32 : i32
    %1 = arith.extui %0 : i1 to i32
    %c0_i32_0 = arith.constant 0 : i32
    %2 = arith.cmpi ne, %1, %c0_i32_0 : i32
    scf.if %2 {
      %c0_16 = arith.constant 0 : index
      %c0_17 = arith.constant 0 : index
      %c0_18 = arith.constant 0 : index
      %34 = vector.load %arg3[%c0_16, %c0_17, %c0_18] : memref<1x128x32xbf16, #tpu.memory_space<vmem>>, vector<1x128x32xbf16>
      %35 = vector.shape_cast %34 : vector<1x128x32xbf16> to vector<128x32xbf16>
      %c0_19 = arith.constant 0 : index
      %c0_20 = arith.constant 0 : index
      %c0_21 = arith.constant 0 : index
      %36 = vector.load %arg5[%c0_19, %c0_20, %c0_21] : memref<1x32x32xbf16, #tpu.memory_space<vmem>>, vector<1x32x32xbf16>
      %37 = vector.shape_cast %36 : vector<1x32x32xbf16> to vector<32x32xbf16>
      %cst_22 = arith.constant dense<0.000000e+00> : vector<128x32xf32>
      %38 = tpu.matmul %35, %37, %cst_22 {dimension_numbers = #tpu.dot_dimension_numbers<[1], [1], [0], [0], [0, 0, 1, 0], [], []>} : vector<128x32xbf16>, vector<32x32xbf16>, vector<128x32xf32> -> vector<128x32xf32>
      %39 = arith.truncf %38 : vector<128x32xf32> to vector<128x32xbf16>
      %c0_23 = arith.constant 0 : index
      %c0_24 = arith.constant 0 : index
      %40 = vector.load %arg7[%c0_23, %c0_24] : memref<128x32xbf16, #tpu.memory_space<vmem>>, vector<128x32xbf16>
      tpu.vector_store %arg7[%c0_23, %c0_24], %39 {strides = array<i32>} : memref<128x32xbf16, #tpu.memory_space<vmem>>, vector<128x32xbf16>,
    } else {
    }
    %c128_i32 = arith.constant 128 : i32
    %3 = arith.muli %arg2, %c128_i32 : i32
    %4 = tpu.assume_multiple %3, 128 : i32
    %c0 = arith.constant 0 : index
    %5 = arith.index_cast %4 : i32 to index
    %c0_1 = arith.constant 0 : index
    %6 = vector.load %arg3[%c0, %5, %c0_1] : memref<1x128x32xbf16, #tpu.memory_space<vmem>>, vector<1x128x32xbf16>
    %7 = vector.shape_cast %6 : vector<1x128x32xbf16> to vector<128x32xbf16>
    %c0_2 = arith.constant 0 : index
    %c0_3 = arith.constant 0 : index
    %c0_4 = arith.constant 0 : index
    %8 = vector.load %arg4[%c0_2, %c0_3, %c0_4] : memref<1x32x32xbf16, #tpu.memory_space<vmem>>, vector<1x32x32xbf16>
    %9 = vector.shape_cast %8 : vector<1x32x32xbf16> to vector<32x32xbf16>
    %cst = arith.constant dense<0.000000e+00> : vector<128x32xf32>
    %10 = tpu.matmul %7, %9, %cst {dimension_numbers = #tpu.dot_dimension_numbers<[1], [1], [0], [0], [0, 0, 1, 0], [], []>} : vector<128x32xbf16>, vector<32x32xbf16>, vector<128x32xf32> -> vector<128x32xf32>
    %cst_5 = arith.constant 0.176776692 : f32
    %11 = vector.broadcast %cst_5 : f32 to vector<128x32xf32>
    %12 = arith.mulf %10, %11 : vector<128x32xf32>
    %13 = arith.truncf %12 : vector<128x32xf32> to vector<128x32xbf16>
    %c0_6 = arith.constant 0 : index
    %c0_7 = arith.constant 0 : index
    %14 = vector.load %arg7[%c0_6, %c0_7] : memref<128x32xbf16, #tpu.memory_space<vmem>>, vector<128x32xbf16>
    %cst_8 = arith.constant dense<0.000000e+00> : vector<128x128xf32>
    %15 = tpu.matmul %13, %14, %cst_8 {dimension_numbers = #tpu.dot_dimension_numbers<[1], [1], [0], [0], [0, 0, 1, 0], [], []>} : vector<128x32xbf16>, vector<128x32xbf16>, vector<128x128xf32> -> vector<128x128xf32>
    %16 = tpu.iota {dimensions = array<i32: 1>} : vector<128x128xi32>
    %c64_i32 = arith.constant 64 : i32
    %17 = vector.broadcast %c64_i32 : i32 to vector<128x128xi32>
    %18 = arith.cmpi slt, %16, %17 : vector<128x128xi32>
    %cst_9 = arith.constant -1.000000e+30 : f32
    %19 = vector.broadcast %cst_9 : f32 to vector<128x128xf32>
    %20 = arith.select %18, %15, %19 : vector<128x128xi1>, vector<128x128xf32>
    %cst_10 = arith.constant dense<0xFF800000> : vector<128xf32>
    %21 = vector.multi_reduction <maximumf>, %20, %cst_10 [1] : vector<128x128xf32> to vector<128xf32>
    %22 = vector.shape_cast %21 : vector<128xf32> to vector<128x1xf32>
    %23 = vector.broadcast %22 : vector<128x1xf32> to vector<128x128xf32>
    %24 = arith.subf %20, %23 : vector<128x128xf32>
    %25 = math.exp %24 : vector<128x128xf32>
    %cst_11 = arith.constant dense<0.000000e+00> : vector<128xf32>
    %26 = vector.multi_reduction <add>, %25, %cst_11 [1] : vector<128x128xf32> to vector<128xf32>
    %27 = vector.shape_cast %26 : vector<128xf32> to vector<128x1xf32>
    %28 = tpu.reciprocal %27 {approx = true} : vector<128x1xf32> -> vector<128x1xf32>
    %29 = vector.broadcast %28 : vector<128x1xf32> to vector<128x128xf32>
    %30 = arith.mulf %25, %29 : vector<128x128xf32>
    %c0_12 = arith.constant 0 : index
    %c0_13 = arith.constant 0 : index
    %c0_14 = arith.constant 0 : index
    %c0_15 = arith.constant 0 : index
    %31 = vector.load %arg6[%c0_12, %c0_13, %c0_14, %c0_15] : memref<1x1x128x128xf32, #tpu.memory_space<vmem>>, vector<1x1x128x128xf32>
    %32 = vector.shape_cast %31 : vector<1x1x128x128xf32> to vector<128x128xf32>
    %33 = vector.shape_cast %30 : vector<128x128xf32> to vector<1x1x128x128xf32>
    tpu.vector_store %arg6[%c0_12, %c0_13, %c0_14, %c0_15], %33 {strides = array<i32>} : memref<1x1x128x128xf32, #tpu.memory_space<vmem>>, vector<1x1x128x128xf32>,
    return
  }
  func.func @transform_0(%arg0: i32, %arg1: i32, %arg2: i32) -> (i32, i32, i32) {
    %c0_i32 = arith.constant 0 : i32
    %c0_i32_0 = arith.constant 0 : i32
    %c0_i32_1 = arith.constant 0 : i32
    return %arg0, %c0_i32, %c0_i32_0 : i32, i32, i32
  }
  func.func @transform_1(%arg0: i32, %arg1: i32, %arg2: i32) -> (i32, i32, i32) {
    %c0_i32 = arith.constant 0 : i32
    %c0_i32_0 = arith.constant 0 : i32
    %c0_i32_1 = arith.constant 0 : i32
    return %arg1, %c0_i32, %c0_i32_0 : i32, i32, i32
  }
  func.func @transform_2(%arg0: i32, %arg1: i32, %arg2: i32) -> (i32, i32, i32) {
    %c0_i32 = arith.constant 0 : i32
    %c0_i32_0 = arith.constant 0 : i32
    %c0_i32_1 = arith.constant 0 : i32
    return %arg1, %c0_i32, %c0_i32_0 : i32, i32, i32
  }
  func.func @transform_3(%arg0: i32, %arg1: i32, %arg2: i32) -> (i32, i32, i32, i32) {
    %c0_i32 = arith.constant 0 : i32
    %c0_i32_0 = arith.constant 0 : i32
    return %arg0, %arg1, %arg2, %c0_i32 : i32, i32, i32, i32
  }
}

</mosaic_0001>

<llo_original>
// kernel: tpu_custom_call.1
$region0: #{tpu_custom_call.1}
  #allocation0 [shape = 'u32[]', space=smem, size = 0x4, offset = 0x4, fixed_abs, tag = 'smem constant byte address 0x4 - core index']
  #allocation1 [shape = 'u32[144,128]{1,0:T(1,128)}', space=vmem, size = 0x12000, scoped, tag = 'internal scratch']
  #allocation2 [shape = 'bf16[128,32]{1,0:T(16,128)(2,1)}', space=vmem, size = 0x8000, scoped, tag = 'scratch operand']
  %s0 = inlined_call_operand.vmem [shape: bf16[2,128,32], index: 0, kind: input, shape index: {}]
  %s1 = inlined_call_operand.vmem [shape: bf16[4,32,32], index: 1, kind: input, shape index: {}]
  %s2 = inlined_call_operand.vmem [shape: bf16[4,32,32], index: 2, kind: input, shape index: {}]
  %s3 = inlined_call_operand.hbm [shape: f32[2,4,128,128], index: 3, kind: output, shape index: {}]
  %s4 = sld [smem:[#allocation0]]
  $region49: #{tpu_custom_call.1} parent=0
    _
  %s6 = ssub.s32 1, %s4
  %s7 = scalar_select 0, %s6, %s4
  $region1: #{tpu_custom_call.1} parent=0
    #allocation3 [shape = 'u8[131072]{0}', space=vmem, size = 0x20000, scoped, tag = 'output window, operand 0']
    #allocation4 [shape = 's32[2]{0}', space=sflag, size = 0x8, scoped, tag = 'scoped memory for tpu_custom_call.1']
    %8 = vsyncpa [#allocation4], 0
    %s9 = scalar_lea.sflag [#allocation4], 1
    %10 = vsyncpa %s9, 0
    loop: start=0, step=1, limit=10
    $region2: #{tpu_custom_call.1} parent=1 // loop_pre_header
      _
    $region3: #{tpu_custom_call.1} parent=1 // loop_header
      %s12 = sphi 0, %s16
      %p13 = scmp.ge.s32.totalorder %s12, 10
      %s19 = sphi 0, %s38
      %s20 = sphi 0, %s34
      %s21 = sphi 0, %s30
      %s22 = sphi 0, %s19
      %s23 = sphi 0, %s20
      %s24 = sphi 0, %s21
      %s25 = sphi 0, %s22
      %s26 = sphi 0, %s23
      %s27 = sphi 0, %s24
      %s41 = sphi 0, %s43
      %s44 = sphi 0, %s41
      %s45 = sphi 0, %s44
      %s61 = sphi 0, %s45
      %s67 = sphi 0, %s69
      %s70 = sphi 0, %s67
      %s71 = sphi 0, %s70
      %s87 = sphi 0, %s71
      %s93 = sphi 0, %s95
      %s96 = sphi 0, %s93
      %s97 = sphi 0, %s96
      %s113 = sphi 0, %s97
      %s123 = sphi 0, %s125
      %s126 = sphi 0, %s123
      %s127 = sphi 0, %s126
      %s143 = sphi 0, %s127
    $region4: #{tpu_custom_call.1} parent=1 // loop_header_branch
      %15 = sbr.rel (%p13) target = $region8
    $region5: #{tpu_custom_call.1} parent=1 // loop_body
      %s17 = ssub.s32 %s12, 1
      %s18 = ssub.s32 %s12, 2
      %s28 = sadd.s32 1, %s21
      %p29 = scmp.ge.s32.totalorder %s28, 1
      %s30 = scalar_select %p29, 0, %s28
      %s31 = sadd.s32 1, %s20
      %s32 = scalar_select %p29, %s31, %s20
      %p33 = scmp.ge.s32.totalorder %s32, 4
      %s34 = scalar_select %p33, 0, %s32
      %s35 = sadd.s32 1, %s19
      %s36 = scalar_select %p33, %s35, %s19
      %p37 = scmp.ge.s32.totalorder %s36, 2
      %s38 = scalar_select %p37, 0, %s36
      %s39 = ssub.s32 %s19, %s38
      %p40 = scmp.eq.s32.totalorder %s39, 0
      %s42 = sadd.s32 %s41, 1
      %s43 = scalar_select %p40, %s41, %s42
      %p46 = pneg %p40
      %p47 = scmp.eq.s32.totalorder %s12, 7
      %p48 = por %p46, %p47
      %p49 = scmp.ne.s32.totalorder %s41, %s44
      %p50 = scmp.eq.s32.totalorder %s12, 0
      %p51 = por %p49, %p50
      %p52 = scmp.ne.s32.totalorder %s41, %s44
      %p53 = scmp.eq.s32.totalorder %s17, 7
      %p54 = por %p52, %p53
      %p55 = scmp.ne.s32.totalorder %s44, %s45
      %p56 = scmp.eq.s32.totalorder %s17, 0
      %p57 = por %p55, %p56
      %p58 = scmp.ne.s32.totalorder %s44, %s45
      %p59 = scmp.eq.s32.totalorder %s18, 7
      %p60 = por %p58, %p59
      %p62 = scmp.ne.s32.totalorder %s45, %s61
      %p63 = scmp.eq.s32.totalorder %s18, 0
      %p64 = por %p62, %p63
      %s65 = ssub.s32 %s20, %s34
      %p66 = scmp.eq.s32.totalorder %s65, 0
      %s68 = sadd.s32 %s67, 1
      %s69 = scalar_select %p66, %s67, %s68
      %p72 = pneg %p66
      %p73 = scmp.eq.s32.totalorder %s12, 7
      %p74 = por %p72, %p73
      %p75 = scmp.ne.s32.totalorder %s67, %s70
      %p76 = scmp.eq.s32.totalorder %s12, 0
      %p77 = por %p75, %p76
      %p78 = scmp.ne.s32.totalorder %s67, %s70
      %p79 = scmp.eq.s32.totalorder %s17, 7
      %p80 = por %p78, %p79
      %p81 = scmp.ne.s32.totalorder %s70, %s71
      %p82 = scmp.eq.s32.totalorder %s17, 0
      %p83 = por %p81, %p82
      %p84 = scmp.ne.s32.totalorder %s70, %s71
      %p85 = scmp.eq.s32.totalorder %s18, 7
      %p86 = por %p84, %p85
      %p88 = scmp.ne.s32.totalorder %s71, %s87
      %p89 = scmp.eq.s32.totalorder %s18, 0
      %p90 = por %p88, %p89
      %s91 = ssub.s32 %s20, %s34
      %p92 = scmp.eq.s32.totalorder %s91, 0
      %s94 = sadd.s32 %s93, 1
      %s95 = scalar_select %p92, %s93, %s94
      %p98 = pneg %p92
      %p99 = scmp.eq.s32.totalorder %s12, 7
      %p100 = por %p98, %p99
      %p101 = scmp.ne.s32.totalorder %s93, %s96
      %p102 = scmp.eq.s32.totalorder %s12, 0
      %p103 = por %p101, %p102
      %p104 = scmp.ne.s32.totalorder %s93, %s96
      %p105 = scmp.eq.s32.totalorder %s17, 7
      %p106 = por %p104, %p105
      %p107 = scmp.ne.s32.totalorder %s96, %s97
      %p108 = scmp.eq.s32.totalorder %s17, 0
      %p109 = por %p107, %p108
      %p110 = scmp.ne.s32.totalorder %s96, %s97
      %p111 = scmp.eq.s32.totalorder %s18, 7
      %p112 = por %p110, %p111
      %p114 = scmp.ne.s32.totalorder %s97, %s113
      %p115 = scmp.eq.s32.totalorder %s18, 0
      %p116 = por %p114, %p115
      %s117 = ssub.s32 %s19, %s38
      %s118 = ssub.s32 %s20, %s34
      %s119 = sor.u32 %s117, %s118
      %s120 = ssub.s32 %s21, %s30
      %s121 = sor.u32 %s119, %s120
      %p122 = scmp.eq.s32.totalorder %s121, 0
      %s124 = sadd.s32 %s123, 1
      %s125 = scalar_select %p122, %s123, %s124
      %p128 = pneg %p122
      %p129 = scmp.eq.s32.totalorder %s12, 7
      %p130 = por %p128, %p129
      %p131 = scmp.ne.s32.totalorder %s123, %s126
      %p132 = scmp.eq.s32.totalorder %s12, 0
      %p133 = por %p131, %p132
      %p134 = scmp.ne.s32.totalorder %s123, %s126
      %p135 = scmp.eq.s32.totalorder %s17, 7
      %p136 = por %p134, %p135
      %p137 = scmp.ne.s32.totalorder %s126, %s127
      %p138 = scmp.eq.s32.totalorder %s17, 0
      %p139 = por %p137, %p138
      %p140 = scmp.ne.s32.totalorder %s126, %s127
      %p141 = scmp.eq.s32.totalorder %s18, 7
      %p142 = por %p140, %p141
      %p144 = scmp.ne.s32.totalorder %s127, %s143
      %p145 = scmp.eq.s32.totalorder %s18, 0
      %p146 = por %p144, %p145
      %p147 = scmp.le.s32.totalorder 1, %s12
      %p148 = scmp.lt.s32.totalorder %s12, 9
      %p149 = pnand %p147, %p148
      %p150 = pneg %p149
      // Predicated region
      $region9: #{tpu_custom_call.1} parent=5 // pred_check
        _
      $region10: #{tpu_custom_call.1} parent=5 // pred_check_branch
        %152 = sbr.rel (%p149) target = $region12
      $region11: #{tpu_custom_call.1} parent=5 // pred_region
        %s153 = ssub.s32 %s12, 1
      $region12: #{tpu_custom_call.1} parent=5 // pred_fallthru
        _
      %p154 = scmp.lt.s32.totalorder %s12, 8
      // Predicated region
      $region13: #{tpu_custom_call.1} parent=5 // pred_check
        %p155 = pneg %p154
      $region14: #{tpu_custom_call.1} parent=5 // pred_check_branch
        %157 = sbr.rel (%p155) target = $region16
      $region15: #{tpu_custom_call.1} parent=5 // pred_region
        // Predicated region
        $region17: #{tpu_custom_call.1} parent=15 // pred_check
          %p158 = pneg %p51
        $region18: #{tpu_custom_call.1} parent=15 // pred_check_branch
          %160 = sbr.rel (%p158) target = $region20
        $region19: #{tpu_custom_call.1} parent=15 // pred_region
          %p161 = scmp.lt.s32.totalorder %s19, 1
          %s162 = scalar_select %p161, %s19, 1
          %s163 = smul.addr %s162, 16
          %s164 = smul.addr %s163, 4
          %s165 = scalar_lea.vmem %s0, %s164
        $region20: #{tpu_custom_call.1} parent=15 // pred_fallthru
          _
        // Predicated region
        $region21: #{tpu_custom_call.1} parent=15 // pred_check
          %p166 = pneg %p77
        $region22: #{tpu_custom_call.1} parent=15 // pred_check_branch
          %168 = sbr.rel (%p166) target = $region24
        $region23: #{tpu_custom_call.1} parent=15 // pred_region
          %p169 = scmp.lt.s32.totalorder %s20, 3
          %s170 = scalar_select %p169, %s20, 3
          %s171 = smul.addr %s170, 4
          %s172 = smul.addr %s171, 4
          %s173 = scalar_lea.vmem %s1, %s172
        $region24: #{tpu_custom_call.1} parent=15 // pred_fallthru
          _
        // Predicated region
        $region25: #{tpu_custom_call.1} parent=15 // pred_check
          %p174 = pneg %p103
        $region26: #{tpu_custom_call.1} parent=15 // pred_check_branch
          %176 = sbr.rel (%p174) target = $region28
        $region27: #{tpu_custom_call.1} parent=15 // pred_region
          %p177 = scmp.lt.s32.totalorder %s20, 3
          %s178 = scalar_select %p177, %s20, 3
          %s179 = smul.addr %s178, 4
          %s180 = smul.addr %s179, 4
          %s181 = scalar_lea.vmem %s2, %s180
        $region28: #{tpu_custom_call.1} parent=15 // pred_fallthru
          _
      $region16: #{tpu_custom_call.1} parent=5 // pred_fallthru
        _
      %p182 = scmp.le.s32.totalorder 1, %s12
      %p183 = scmp.lt.s32.totalorder %s12, 9
      %p184 = pnand %p182, %p183
      %p185 = pneg %p184
      // Predicated region
      $region29: #{tpu_custom_call.1} parent=5 // pred_check
        _
      $region30: #{tpu_custom_call.1} parent=5 // pred_check_branch
        %187 = sbr.rel (%p184) target = $region32
      $region31: #{tpu_custom_call.1} parent=5 // pred_region
        %s188 = ssub.s32 %s12, 1
        %p189 = scmp.lt.s32.totalorder %s22, 1
        %s190 = scalar_select %p189, %s22, 1
        %s191 = smul.addr %s190, 16
        %s192 = smul.addr %s191, 4
        %s193 = scalar_lea.vmem %s0, %s192
        %p194 = pneg %p57
        %p195 = pneg %p54
        %p196 = scmp.lt.s32.totalorder %s23, 3
        %s197 = scalar_select %p196, %s23, 3
        %s198 = smul.addr %s197, 4
        %s199 = smul.addr %s198, 4
        %s200 = scalar_lea.vmem %s1, %s199
        %p201 = pneg %p83
        %p202 = pneg %p80
        %p203 = scmp.lt.s32.totalorder %s23, 3
        %s204 = scalar_select %p203, %s23, 3
        %s205 = smul.addr %s204, 4
        %s206 = smul.addr %s205, 4
        %s207 = scalar_lea.vmem %s2, %s206
        %p208 = pneg %p109
        %p209 = pneg %p106
        %p210 = pneg %p139
        %p211 = pneg %p136
        %s212 = sand.u32 %s126, 1
        %s213 = scalar_lea.sflag [#allocation4], %s212
        %s214 = sand.u32 %s126, 1
        %s215 = smul.addr %s214, 128
        %s216 = scalar_lea.vmem [#allocation3], %s215
        %p217 = scmp.lt.s32.totalorder %s22, 1
        %s218 = scalar_select %p217, %s22, 1
        %s219 = smul.addr %s218, 16
        %s220 = smul.addr %s219, 4
        %s221 = scalar_lea.vmem %s0, %s220
        %p222 = scmp.lt.s32.totalorder %s23, 3
        %s223 = scalar_select %p222, %s23, 3
        %s224 = smul.addr %s223, 4
        %s225 = smul.addr %s224, 4
        %s226 = scalar_lea.vmem %s1, %s225
        %p227 = scmp.lt.s32.totalorder %s23, 3
        %s228 = scalar_select %p227, %s23, 3
        %s229 = smul.addr %s228, 4
        %s230 = smul.addr %s229, 4
        %s231 = scalar_lea.vmem %s2, %s230
        %s232 = smul.u32 16, %s24
        %p234 = scmp.eq.s32.totalorder %s24, 0
        // Predicated region
        $region33: #{tpu_custom_call.1} parent=31 // pred_check
          %p235 = pneg %p234
        $region34: #{tpu_custom_call.1} parent=31 // pred_check_branch
          %237 = sbr.rel (%p235) target = $region36
        $region35: #{tpu_custom_call.1} parent=31 // pred_region
          %v238 = vld [vmem:[%s221] sm:$0xf]
          %v239 = vld [vmem:[%s221 + $0x4] sm:$0xf]
          %v240 = vld [vmem:[%s221 + $0x8] sm:$0xf]
          %v241 = vld [vmem:[%s221 + $0xc] sm:$0xf]
          %v242 = vld [vmem:[%s221 + $0x10] sm:$0xf]
          %v243 = vld [vmem:[%s221 + $0x14] sm:$0xf]
          %v244 = vld [vmem:[%s221 + $0x18] sm:$0xf]
          %v245 = vld [vmem:[%s221 + $0x1c] sm:$0xf]
          %v246 = vld [vmem:[%s221 + $0x20] sm:$0xf]
          %v247 = vld [vmem:[%s221 + $0x24] sm:$0xf]
          %v248 = vld [vmem:[%s221 + $0x28] sm:$0xf]
          %v249 = vld [vmem:[%s221 + $0x2c] sm:$0xf]
          %v250 = vld [vmem:[%s221 + $0x30] sm:$0xf]
          %v251 = vld [vmem:[%s221 + $0x34] sm:$0xf]
          %v252 = vld [vmem:[%s221 + $0x38] sm:$0xf]
          %v253 = vld [vmem:[%s221 + $0x3c] sm:$0xf]
          %v254 = vld [vmem:[%s231] sm:$0xf]
          %v255 = vld [vmem:[%s231 + $0x4] sm:$0xf]
          %v256 = vld [vmem:[%s231 + $0x8] sm:$0xf]
          %v257 = vld [vmem:[%s231 + $0xc] sm:$0xf]
          %v274 = vunpack.c.l.b16 %v238
          %v275 = vunpack.c.l.b16 %v239
          %v276 = vunpack.c.l.b16 %v240
          %v277 = vunpack.c.l.b16 %v241
          %v278 = vunpack.c.l.b16 %v242
          %v279 = vunpack.c.l.b16 %v243
          %v280 = vunpack.c.l.b16 %v244
          %v281 = vunpack.c.l.b16 %v245
          %v282 = vunpack.c.l.b16 %v246
          %v283 = vunpack.c.l.b16 %v247
          %v284 = vunpack.c.l.b16 %v248
          %v285 = vunpack.c.l.b16 %v249
          %v286 = vunpack.c.l.b16 %v250
          %v287 = vunpack.c.l.b16 %v251
          %v288 = vunpack.c.l.b16 %v252
          %v289 = vunpack.c.l.b16 %v253
          %v290 = vpack.c.b16 %v275, %v274
          %v291 = vpack.c.b16 %v277, %v276
          %v292 = vpack.c.b16 %v279, %v278
          %v293 = vpack.c.b16 %v281, %v280
          %v294 = vpack.c.b16 %v283, %v282
          %v295 = vpack.c.b16 %v285, %v284
          %v296 = vpack.c.b16 %v287, %v286
          %v297 = vpack.c.b16 %v289, %v288
          %v302 = vunpack.c.l.b16 %v254
          %v303 = vunpack.c.l.b16 %v255
          %v304 = vunpack.c.l.b16 %v256
          %v305 = vunpack.c.l.b16 %v257
          %v306 = vpack.c.b16 %v303, %v302
          %v307 = vpack.c.b16 %v305, %v304
          %vm308 = vcmask 261120
          %v310 = vsel %vm308, %v290, 0
          %v313 = vsel %vm308, %v291, 0
          %v316 = vsel %vm308, %v292, 0
          %v319 = vsel %vm308, %v293, 0
          %v322 = vsel %vm308, %v294, 0
          %v325 = vsel %vm308, %v295, 0
          %v328 = vsel %vm308, %v296, 0
          %v331 = vsel %vm308, %v297, 0
          %v334 = vsel %vm308, %v306, 0
          %v337 = vsel %vm308, %v307, 0
          %339 = vmatprep.subr.bf16.mxu0 0
          %340 = vmatpush1.bf16.xpose.msra.mxu0 %v334
          %341 = vmatprep.subr.bf16.mxu0 0
          %342 = vmatpush1.bf16.xpose.msra.mxu0 %v337
          %343 = vmatprep.subr.bf16.mxu0 0
          %344 = vmatpush1.bf16.xpose.msra.mxu0 0
          %345 = vmatprep.subr.bf16.mxu0 0
          %346 = vmatpush1.bf16.xpose.msra.mxu0 0
          %347 = vmatprep.subr.bf16.mxu0 0
          %348 = vmatpush1.bf16.xpose.msra.mxu0 0
          %349 = vmatprep.subr.bf16.mxu0 0
          %350 = vmatpush1.bf16.xpose.msra.mxu0 0
          %351 = vmatprep.subr.bf16.mxu0 0
          %352 = vmatpush1.bf16.xpose.msra.mxu0 0
          %353 = vmatprep.subr.bf16.mxu0 0
          %354 = vmatpush1.bf16.xpose.msra.mxu0 0
          %355 = vmatprep.subr.bf16.mxu0 0
          %356 = vmatpush1.bf16.xpose.msra.mxu0 0
          %357 = vmatprep.subr.bf16.mxu0 0
          %358 = vmatpush1.bf16.xpose.msra.mxu0 0
          %359 = vmatprep.subr.bf16.mxu0 0
          %360 = vmatpush1.bf16.xpose.msra.mxu0 0
          %361 = vmatprep.subr.bf16.mxu0 0
          %362 = vmatpush1.bf16.xpose.msra.mxu0 0
          %363 = vmatprep.subr.bf16.mxu0 0
          %364 = vmatpush1.bf16.xpose.msra.mxu0 0
          %365 = vmatprep.subr.bf16.mxu0 0
          %366 = vmatpush1.bf16.xpose.msra.mxu0 0
          %367 = vmatprep.subr.bf16.mxu0 0
          %368 = vmatpush1.bf16.xpose.msra.mxu0 0
          %369 = vmatprep.subr.bf16.mxu0 0
          %370 = vmatpush1.bf16.xpose.msra.mxu0 0
          %371 = vmatprep.mubr.bf16.mxu0 0
          %372 = vmatmul.mubr.bf16.gmra.mrb[0].mxu0 %v310
          %v373 = vpop.f32.mrb[0].mxu0
          %v374 = vadd.f32 0.0, %v373
          %v375 = vpop.f32.mrb[0].mxu0
          %v376 = vpop.f32.mrb[0].mxu0
          %v377 = vadd.f32 0.0, %v376
          %v378 = vpop.f32.mrb[0].mxu0
          %379 = vmatprep.mubr.bf16.mxu0 0
          %380 = vmatmul.mubr.bf16.gmra.mrb[0].mxu0 %v313
          %v381 = vpop.f32.mrb[0].mxu0
          %v382 = vadd.f32 0.0, %v381
          %v383 = vpop.f32.mrb[0].mxu0
          %v384 = vpop.f32.mrb[0].mxu0
          %v385 = vadd.f32 0.0, %v384
          %v386 = vpop.f32.mrb[0].mxu0
          %387 = vmatprep.mubr.bf16.mxu0 0
          %388 = vmatmul.mubr.bf16.gmra.mrb[0].mxu0 %v316
          %v389 = vpop.f32.mrb[0].mxu0
          %v390 = vadd.f32 0.0, %v389
          %v391 = vpop.f32.mrb[0].mxu0
          %v392 = vpop.f32.mrb[0].mxu0
          %v393 = vadd.f32 0.0, %v392
          %v394 = vpop.f32.mrb[0].mxu0
          %395 = vmatprep.mubr.bf16.mxu0 0
          %396 = vmatmul.mubr.bf16.gmra.mrb[0].mxu0 %v319
          %v397 = vpop.f32.mrb[0].mxu0
          %v398 = vadd.f32 0.0, %v397
          %v399 = vpop.f32.mrb[0].mxu0
          %v400 = vpop.f32.mrb[0].mxu0
          %v401 = vadd.f32 0.0, %v400
          %v402 = vpop.f32.mrb[0].mxu0
          %403 = vmatprep.mubr.bf16.mxu0 0
          %404 = vmatmul.mubr.bf16.gmra.mrb[0].mxu0 %v322
          %v405 = vpop.f32.mrb[0].mxu0
          %v406 = vadd.f32 0.0, %v405
          %v407 = vpop.f32.mrb[0].mxu0
          %v408 = vpop.f32.mrb[0].mxu0
          %v409 = vadd.f32 0.0, %v408
          %v410 = vpop.f32.mrb[0].mxu0
          %411 = vmatprep.mubr.bf16.mxu0 0
          %412 = vmatmul.mubr.bf16.gmra.mrb[0].mxu0 %v325
          %v413 = vpop.f32.mrb[0].mxu0
          %v414 = vadd.f32 0.0, %v413
          %v415 = vpop.f32.mrb[0].mxu0
          %v416 = vpop.f32.mrb[0].mxu0
          %v417 = vadd.f32 0.0, %v416
          %v418 = vpop.f32.mrb[0].mxu0
          %419 = vmatprep.mubr.bf16.mxu0 0
          %420 = vmatmul.mubr.bf16.gmra.mrb[0].mxu0 %v328
          %v421 = vpop.f32.mrb[0].mxu0
          %v422 = vadd.f32 0.0, %v421
          %v423 = vpop.f32.mrb[0].mxu0
          %v424 = vpop.f32.mrb[0].mxu0
          %v425 = vadd.f32 0.0, %v424
          %v426 = vpop.f32.mrb[0].mxu0
          %427 = vmatprep.mubr.bf16.mxu0 0
          %428 = vmatmul.mubr.bf16.gmra.mrb[0].mxu0 %v331
          %v429 = vpop.f32.mrb[0].mxu0
          %v430 = vadd.f32 0.0, %v429
          %v431 = vpop.f32.mrb[0].mxu0
          %v432 = vpop.f32.mrb[0].mxu0
          %v433 = vadd.f32 0.0, %v432
          %v434 = vpop.f32.mrb[0].mxu0
          %435 = vdwg.mxu0
          %v436 = vpack.c.bf16 %v377, %v374
          %v437 = vpack.c.bf16 %v385, %v382
          %v438 = vpack.c.bf16 %v393, %v390
          %v439 = vpack.c.bf16 %v401, %v398
          %v440 = vpack.c.bf16 %v409, %v406
          %v441 = vpack.c.bf16 %v417, %v414
          %v442 = vpack.c.bf16 %v425, %v422
          %v443 = vpack.c.bf16 %v433, %v430
          %444 = vst.msk [vmem:[#allocation2] sm:$0xff] %vm308, %v436
          %445 = vst.msk [vmem:[#allocation2 + $0x8] sm:$0xff] %vm308, %v437
          %446 = vst.msk [vmem:[#allocation2 + $0x10] sm:$0xff] %vm308, %v438
          %447 = vst.msk [vmem:[#allocation2 + $0x18] sm:$0xff] %vm308, %v439
          %448 = vst.msk [vmem:[#allocation2 + $0x20] sm:$0xff] %vm308, %v440
          %449 = vst.msk [vmem:[#allocation2 + $0x28] sm:$0xff] %vm308, %v441
          %450 = vst.msk [vmem:[#allocation2 + $0x30] sm:$0xff] %vm308, %v442
          %451 = vst.msk [vmem:[#allocation2 + $0x38] sm:$0xff] %vm308, %v443
        $region36: #{tpu_custom_call.1} parent=31 // pred_fallthru
          _
        %s452 = smul.u32 %s24, 128
        %s453 = sshra.s32 %s452, 3
        %s454 = sand.u32 %s452, 7
        %s455 = smul.addr %s453, 4
        %s456 = scalar_lea.vmem %s221, %s455
        %v457 = vld [vmem:[%s456] sm:$0xf]
        %v458 = vld [vmem:[%s456 + $0x4] sm:$0xf]
        %v459 = vld [vmem:[%s456 + $0x8] sm:$0xf]
        %v460 = vld [vmem:[%s456 + $0xc] sm:$0xf]
        %v461 = vld [vmem:[%s456 + $0x10] sm:$0xf]
        %v462 = vld [vmem:[%s456 + $0x14] sm:$0xf]
        %v463 = vld [vmem:[%s456 + $0x18] sm:$0xf]
        %v464 = vld [vmem:[%s456 + $0x1c] sm:$0xf]
        %v465 = vld [vmem:[%s456 + $0x20] sm:$0xf]
        %v466 = vld [vmem:[%s456 + $0x24] sm:$0xf]
        %v467 = vld [vmem:[%s456 + $0x28] sm:$0xf]
        %v468 = vld [vmem:[%s456 + $0x2c] sm:$0xf]
        %v469 = vld [vmem:[%s456 + $0x30] sm:$0xf]
        %v470 = vld [vmem:[%s456 + $0x34] sm:$0xf]
        %v471 = vld [vmem:[%s456 + $0x38] sm:$0xf]
        %v472 = vld [vmem:[%s456 + $0x3c] sm:$0xf]
        %v473 = vld [vmem:[%s226] sm:$0xf]
        %v474 = vld [vmem:[%s226 + $0x4] sm:$0xf]
        %v475 = vld [vmem:[%s226 + $0x8] sm:$0xf]
        %v476 = vld [vmem:[%s226 + $0xc] sm:$0xf]
        %v493 = vunpack.c.l.b16 %v457
        %v494 = vunpack.c.l.b16 %v458
        %v495 = vunpack.c.l.b16 %v459
        %v496 = vunpack.c.l.b16 %v460
        %v497 = vunpack.c.l.b16 %v461
        %v498 = vunpack.c.l.b16 %v462
        %v499 = vunpack.c.l.b16 %v463
        %v500 = vunpack.c.l.b16 %v464
        %v501 = vunpack.c.l.b16 %v465
        %v502 = vunpack.c.l.b16 %v466
        %v503 = vunpack.c.l.b16 %v467
        %v504 = vunpack.c.l.b16 %v468
        %v505 = vunpack.c.l.b16 %v469
        %v506 = vunpack.c.l.b16 %v470
        %v507 = vunpack.c.l.b16 %v471
        %v508 = vunpack.c.l.b16 %v472
        %v509 = vpack.c.b16 %v494, %v493
        %v510 = vpack.c.b16 %v496, %v495
        %v511 = vpack.c.b16 %v498, %v497
        %v512 = vpack.c.b16 %v500, %v499
        %v513 = vpack.c.b16 %v502, %v501
        %v514 = vpack.c.b16 %v504, %v503
        %v515 = vpack.c.b16 %v506, %v505
        %v516 = vpack.c.b16 %v508, %v507
        %v521 = vunpack.c.l.b16 %v473
        %v522 = vunpack.c.l.b16 %v474
        %v523 = vunpack.c.l.b16 %v475
        %v524 = vunpack.c.l.b16 %v476
        %v525 = vpack.c.b16 %v522, %v521
        %v526 = vpack.c.b16 %v524, %v523
        %vm527 = vcmask 261120
        %v529 = vsel %vm527, %v509, 0
        %v532 = vsel %vm527, %v510, 0
        %v535 = vsel %vm527, %v511, 0
        %v538 = vsel %vm527, %v512, 0
        %v541 = vsel %vm527, %v513, 0
        %v544 = vsel %vm527, %v514, 0
        %v547 = vsel %vm527, %v515, 0
        %v550 = vsel %vm527, %v516, 0
        %v553 = vsel %vm527, %v525, 0
        %v556 = vsel %vm527, %v526, 0
        %558 = vmatprep.subr.bf16.mxu0 0
        %559 = vmatpush1.bf16.xpose.msra.mxu0 %v553
        %560 = vmatprep.subr.bf16.mxu0 0
        %561 = vmatpush1.bf16.xpose.msra.mxu0 %v556
        %562 = vmatprep.subr.bf16.mxu0 0
        %563 = vmatpush1.bf16.xpose.msra.mxu0 0
        %564 = vmatprep.subr.bf16.mxu0 0
        %565 = vmatpush1.bf16.xpose.msra.mxu0 0
        %566 = vmatprep.subr.bf16.mxu0 0
        %567 = vmatpush1.bf16.xpose.msra.mxu0 0
        %568 = vmatprep.subr.bf16.mxu0 0
        %569 = vmatpush1.bf16.xpose.msra.mxu0 0
        %570 = vmatprep.subr.bf16.mxu0 0
        %571 = vmatpush1.bf16.xpose.msra.mxu0 0
        %572 = vmatprep.subr.bf16.mxu0 0
        %573 = vmatpush1.bf16.xpose.msra.mxu0 0
        %574 = vmatprep.subr.bf16.mxu0 0
        %575 = vmatpush1.bf16.xpose.msra.mxu0 0
        %576 = vmatprep.subr.bf16.mxu0 0
        %577 = vmatpush1.bf16.xpose.msra.mxu0 0
        %578 = vmatprep.subr.bf16.mxu0 0
        %579 = vmatpush1.bf16.xpose.msra.mxu0 0
        %580 = vmatprep.subr.bf16.mxu0 0
        %581 = vmatpush1.bf16.xpose.msra.mxu0 0
        %582 = vmatprep.subr.bf16.mxu0 0
        %583 = vmatpush1.bf16.xpose.msra.mxu0 0
        %584 = vmatprep.subr.bf16.mxu0 0
        %585 = vmatpush1.bf16.xpose.msra.mxu0 0
        %586 = vmatprep.subr.bf16.mxu0 0
        %587 = vmatpush1.bf16.xpose.msra.mxu0 0
        %588 = vmatprep.subr.bf16.mxu0 0
        %589 = vmatpush1.bf16.xpose.msra.mxu0 0
        %590 = vmatprep.mubr.bf16.mxu0 0
        %591 = vmatmul.mubr.bf16.gmra.mrb[0].mxu0 %v529
        %v592 = vpop.f32.mrb[0].mxu0
        %v593 = vadd.f32 0.0, %v592
        %v594 = vpop.f32.mrb[0].mxu0
        %v595 = vpop.f32.mrb[0].mxu0
        %v596 = vadd.f32 0.0, %v595
        %v597 = vpop.f32.mrb[0].mxu0
        %598 = vmatprep.mubr.bf16.mxu0 0
        %599 = vmatmul.mubr.bf16.gmra.mrb[0].mxu0 %v532
        %v600 = vpop.f32.mrb[0].mxu0
        %v601 = vadd.f32 0.0, %v600
        %v602 = vpop.f32.mrb[0].mxu0
        %v603 = vpop.f32.mrb[0].mxu0
        %v604 = vadd.f32 0.0, %v603
        %v605 = vpop.f32.mrb[0].mxu0
        %606 = vmatprep.mubr.bf16.mxu0 0
        %607 = vmatmul.mubr.bf16.gmra.mrb[0].mxu0 %v535
        %v608 = vpop.f32.mrb[0].mxu0
        %v609 = vadd.f32 0.0, %v608
        %v610 = vpop.f32.mrb[0].mxu0
        %v611 = vpop.f32.mrb[0].mxu0
        %v612 = vadd.f32 0.0, %v611
        %v613 = vpop.f32.mrb[0].mxu0
        %614 = vmatprep.mubr.bf16.mxu0 0
        %615 = vmatmul.mubr.bf16.gmra.mrb[0].mxu0 %v538
        %v616 = vpop.f32.mrb[0].mxu0
        %v617 = vadd.f32 0.0, %v616
        %v618 = vpop.f32.mrb[0].mxu0
        %v619 = vpop.f32.mrb[0].mxu0
        %v620 = vadd.f32 0.0, %v619
        %v621 = vpop.f32.mrb[0].mxu0
        %622 = vmatprep.mubr.bf16.mxu0 0
        %623 = vmatmul.mubr.bf16.gmra.mrb[0].mxu0 %v541
        %v624 = vpop.f32.mrb[0].mxu0
        %v625 = vadd.f32 0.0, %v624
        %v626 = vpop.f32.mrb[0].mxu0
        %v627 = vpop.f32.mrb[0].mxu0
        %v628 = vadd.f32 0.0, %v627
        %v629 = vpop.f32.mrb[0].mxu0
        %630 = vmatprep.mubr.bf16.mxu0 0
        %631 = vmatmul.mubr.bf16.gmra.mrb[0].mxu0 %v544
        %v632 = vpop.f32.mrb[0].mxu0
        %v633 = vadd.f32 0.0, %v632
        %v634 = vpop.f32.mrb[0].mxu0
        %v635 = vpop.f32.mrb[0].mxu0
        %v636 = vadd.f32 0.0, %v635
        %v637 = vpop.f32.mrb[0].mxu0
        %638 = vmatprep.mubr.bf16.mxu0 0
        %639 = vmatmul.mubr.bf16.gmra.mrb[0].mxu0 %v547
        %v640 = vpop.f32.mrb[0].mxu0
        %v641 = vadd.f32 0.0, %v640
        %v642 = vpop.f32.mrb[0].mxu0
        %v643 = vpop.f32.mrb[0].mxu0
        %v644 = vadd.f32 0.0, %v643
        %v645 = vpop.f32.mrb[0].mxu0
        %646 = vmatprep.mubr.bf16.mxu0 0
        %647 = vmatmul.mubr.bf16.gmra.mrb[0].mxu0 %v550
        %v648 = vpop.f32.mrb[0].mxu0
        %v649 = vadd.f32 0.0, %v648
        %v650 = vpop.f32.mrb[0].mxu0
        %v651 = vpop.f32.mrb[0].mxu0
        %v652 = vadd.f32 0.0, %v651
        %v653 = vpop.f32.mrb[0].mxu0
        %654 = vdwg.mxu0
        %v655 = vmul.f32 %v593, 0.17677669
        %v656 = vmul.f32 %v596, 0.17677669
        %v657 = vmul.f32 %v601, 0.17677669
        %v658 = vmul.f32 %v604, 0.17677669
        %v659 = vmul.f32 %v609, 0.17677669
        %v660 = vmul.f32 %v612, 0.17677669
        %v661 = vmul.f32 %v617, 0.17677669
        %v662 = vmul.f32 %v620, 0.17677669
        %v663 = vmul.f32 %v625, 0.17677669
        %v664 = vmul.f32 %v628, 0.17677669
        %v665 = vmul.f32 %v633, 0.17677669
        %v666 = vmul.f32 %v636, 0.17677669
        %v667 = vmul.f32 %v641, 0.17677669
        %v668 = vmul.f32 %v644, 0.17677669
        %v669 = vmul.f32 %v649, 0.17677669
        %v670 = vmul.f32 %v652, 0.17677669
        %v671 = vpack.c.bf16 %v656, %v655
        %v672 = vpack.c.bf16 %v658, %v657
        %v673 = vpack.c.bf16 %v660, %v659
        %v674 = vpack.c.bf16 %v662, %v661
        %v675 = vpack.c.bf16 %v664, %v663
        %v676 = vpack.c.bf16 %v666, %v665
        %v677 = vpack.c.bf16 %v668, %v667
        %v678 = vpack.c.bf16 %v670, %v669
        %v679 = vld [vmem:[#allocation2] sm:$0xff]
        %v680 = vld [vmem:[#allocation2 + $0x8] sm:$0xff]
        %v681 = vld [vmem:[#allocation2 + $0x10] sm:$0xff]
        %v682 = vld [vmem:[#allocation2 + $0x18] sm:$0xff]
        %v683 = vld [vmem:[#allocation2 + $0x20] sm:$0xff]
        %v684 = vld [vmem:[#allocation2 + $0x28] sm:$0xff]
        %v685 = vld [vmem:[#allocation2 + $0x30] sm:$0xff]
        %v686 = vld [vmem:[#allocation2 + $0x38] sm:$0xff]
        %v688 = vsel %vm527, %v671, 0
        %v691 = vsel %vm527, %v672, 0
        %v694 = vsel %vm527, %v673, 0
        %v697 = vsel %vm527, %v674, 0
        %v700 = vsel %vm527, %v675, 0
        %v703 = vsel %vm527, %v676, 0
        %v706 = vsel %vm527, %v677, 0
        %v709 = vsel %vm527, %v678, 0
        %v712 = vsel %vm527, %v679, 0
        %v715 = vsel %vm527, %v680, 0
        %v718 = vsel %vm527, %v681, 0
        %v721 = vsel %vm527, %v682, 0
        %v724 = vsel %vm527, %v683, 0
        %v727 = vsel %vm527, %v684, 0
        %v730 = vsel %vm527, %v685, 0
        %v733 = vsel %vm527, %v686, 0
        %735 = vmatprep.subr.bf16.mxu0 0
        %736 = vmatpush1.bf16.xpose.msra.mxu0 %v712
        %737 = vmatprep.subr.bf16.mxu0 0
        %738 = vmatpush1.bf16.xpose.msra.mxu0 %v715
        %739 = vmatprep.subr.bf16.mxu0 0
        %740 = vmatpush1.bf16.xpose.msra.mxu0 %v718
        %741 = vmatprep.subr.bf16.mxu0 0
        %742 = vmatpush1.bf16.xpose.msra.mxu0 %v721
        %743 = vmatprep.subr.bf16.mxu0 0
        %744 = vmatpush1.bf16.xpose.msra.mxu0 %v724
        %745 = vmatprep.subr.bf16.mxu0 0
        %746 = vmatpush1.bf16.xpose.msra.mxu0 %v727
        %747 = vmatprep.subr.bf16.mxu0 0
        %748 = vmatpush1.bf16.xpose.msra.mxu0 %v730
        %749 = vmatprep.subr.bf16.mxu0 0
        %750 = vmatpush1.bf16.xpose.msra.mxu0 %v733
        %751 = vmatprep.subr.bf16.mxu0 0
        %752 = vmatpush1.bf16.xpose.msra.mxu0 0
        %753 = vmatprep.subr.bf16.mxu0 0
        %754 = vmatpush1.bf16.xpose.msra.mxu0 0
        %755 = vmatprep.subr.bf16.mxu0 0
        %756 = vmatpush1.bf16.xpose.msra.mxu0 0
        %757 = vmatprep.subr.bf16.mxu0 0
        %758 = vmatpush1.bf16.xpose.msra.mxu0 0
        %759 = vmatprep.subr.bf16.mxu0 0
        %760 = vmatpush1.bf16.xpose.msra.mxu0 0
        %761 = vmatprep.subr.bf16.mxu0 0
        %762 = vmatpush1.bf16.xpose.msra.mxu0 0
        %763 = vmatprep.subr.bf16.mxu0 0
        %764 = vmatpush1.bf16.xpose.msra.mxu0 0
        %765 = vmatprep.subr.bf16.mxu0 0
        %766 = vmatpush1.bf16.xpose.msra.mxu0 0
        %767 = vmatprep.mubr.bf16.mxu0 0
        %768 = vmatmul.mubr.bf16.gmra.mrb[0].mxu0 %v688
        %v769 = vpop.f32.mrb[0].mxu0
        %v770 = vadd.f32 0.0, %v769
        %v771 = vpop.f32.mrb[0].mxu0
        %v772 = vpop.f32.mrb[0].mxu0
        %v773 = vadd.f32 0.0, %v772
        %v774 = vpop.f32.mrb[0].mxu0
        %775 = vmatprep.mubr.bf16.mxu0 0
        %776 = vmatmul.mubr.bf16.gmra.mrb[0].mxu0 %v691
        %v777 = vpop.f32.mrb[0].mxu0
        %v778 = vadd.f32 0.0, %v777
        %v779 = vpop.f32.mrb[0].mxu0
        %v780 = vpop.f32.mrb[0].mxu0
        %v781 = vadd.f32 0.0, %v780
        %v782 = vpop.f32.mrb[0].mxu0
        %783 = vmatprep.mubr.bf16.mxu0 0
        %784 = vmatmul.mubr.bf16.gmra.mrb[0].mxu0 %v694
        %v785 = vpop.f32.mrb[0].mxu0
        %v786 = vadd.f32 0.0, %v785
        %v787 = vpop.f32.mrb[0].mxu0
        %v788 = vpop.f32.mrb[0].mxu0
        %v789 = vadd.f32 0.0, %v788
        %v790 = vpop.f32.mrb[0].mxu0
        %791 = vmatprep.mubr.bf16.mxu0 0
        %792 = vmatmul.mubr.bf16.gmra.mrb[0].mxu0 %v697
        %v793 = vpop.f32.mrb[0].mxu0
        %v794 = vadd.f32 0.0, %v793
        %v795 = vpop.f32.mrb[0].mxu0
        %v796 = vpop.f32.mrb[0].mxu0
        %v797 = vadd.f32 0.0, %v796
        %v798 = vpop.f32.mrb[0].mxu0
        %799 = vmatprep.mubr.bf16.mxu0 0
        %800 = vmatmul.mubr.bf16.gmra.mrb[0].mxu0 %v700
        %v801 = vpop.f32.mrb[0].mxu0
        %v802 = vadd.f32 0.0, %v801
        %v803 = vpop.f32.mrb[0].mxu0
        %v804 = vpop.f32.mrb[0].mxu0
        %v805 = vadd.f32 0.0, %v804
        %v806 = vpop.f32.mrb[0].mxu0
        %807 = vmatprep.mubr.bf16.mxu0 0
        %808 = vmatmul.mubr.bf16.gmra.mrb[0].mxu0 %v703
        %v809 = vpop.f32.mrb[0].mxu0
        %v810 = vadd.f32 0.0, %v809
        %v811 = vpop.f32.mrb[0].mxu0
        %v812 = vpop.f32.mrb[0].mxu0
        %v813 = vadd.f32 0.0, %v812
        %v814 = vpop.f32.mrb[0].mxu0
        %815 = vmatprep.mubr.bf16.mxu0 0
        %816 = vmatmul.mubr.bf16.gmra.mrb[0].mxu0 %v706
        %v817 = vpop.f32.mrb[0].mxu0
        %v818 = vadd.f32 0.0, %v817
        %v819 = vpop.f32.mrb[0].mxu0
        %v820 = vpop.f32.mrb[0].mxu0
        %v821 = vadd.f32 0.0, %v820
        %v822 = vpop.f32.mrb[0].mxu0
        %823 = vmatprep.mubr.bf16.mxu0 0
        %824 = vmatmul.mubr.bf16.gmra.mrb[0].mxu0 %v709
        %v825 = vpop.f32.mrb[0].mxu0
        %v826 = vadd.f32 0.0, %v825
        %v827 = vpop.f32.mrb[0].mxu0
        %v828 = vpop.f32.mrb[0].mxu0
        %v829 = vadd.f32 0.0, %v828
        %v830 = vpop.f32.mrb[0].mxu0
        %831 = vdwg.mxu0
        %v832 = vlaneseq
        %v833 = vand.u32 %v832, 127
        %vm834 = vcmp.lt.s32.totalorder %v833, 64
        %v835 = vsel %vm834, %v770, -1e+30
        %v836 = vsel %vm834, %v773, -1e+30
        %v837 = vsel %vm834, %v778, -1e+30
        %v838 = vsel %vm834, %v781, -1e+30
        %v839 = vsel %vm834, %v786, -1e+30
        %v840 = vsel %vm834, %v789, -1e+30
        %v841 = vsel %vm834, %v794, -1e+30
        %v842 = vsel %vm834, %v797, -1e+30
        %v843 = vsel %vm834, %v802, -1e+30
        %v844 = vsel %vm834, %v805, -1e+30
        %v845 = vsel %vm834, %v810, -1e+30
        %v846 = vsel %vm834, %v813, -1e+30
        %v847 = vsel %vm834, %v818, -1e+30
        %v848 = vsel %vm834, %v821, -1e+30
        %v849 = vsel %vm834, %v826, -1e+30
        %v850 = vsel %vm834, %v829, -1e+30
        %851 = vmax.xlane.f32.xlu0 %v835
        %v852 = vpop.xlane.xlu0 %851
        %853 = vmax.xlane.f32.xlu0 %v836
        %v854 = vpop.xlane.xlu0 %853
        %855 = vmax.xlane.f32.xlu0 %v837
        %v856 = vpop.xlane.xlu0 %855
        %857 = vmax.xlane.f32.xlu0 %v838
        %v858 = vpop.xlane.xlu0 %857
        %859 = vmax.xlane.f32.xlu0 %v839
        %v860 = vpop.xlane.xlu0 %859
        %861 = vmax.xlane.f32.xlu0 %v840
        %v862 = vpop.xlane.xlu0 %861
        %863 = vmax.xlane.f32.xlu0 %v841
        %v864 = vpop.xlane.xlu0 %863
        %865 = vmax.xlane.f32.xlu0 %v842
        %v866 = vpop.xlane.xlu0 %865
        %867 = vmax.xlane.f32.xlu0 %v843
        %v868 = vpop.xlane.xlu0 %867
        %869 = vmax.xlane.f32.xlu0 %v844
        %v870 = vpop.xlane.xlu0 %869
        %871 = vmax.xlane.f32.xlu0 %v845
        %v872 = vpop.xlane.xlu0 %871
        %873 = vmax.xlane.f32.xlu0 %v846
        %v874 = vpop.xlane.xlu0 %873
        %875 = vmax.xlane.f32.xlu0 %v847
        %v876 = vpop.xlane.xlu0 %875
        %877 = vmax.xlane.f32.xlu0 %v848
        %v878 = vpop.xlane.xlu0 %877
        %879 = vmax.xlane.f32.xlu0 %v849
        %v880 = vpop.xlane.xlu0 %879
        %881 = vmax.xlane.f32.xlu0 %v850
        %v882 = vpop.xlane.xlu0 %881
        %v883 = vsub.f32 %v835, %v852
        %v884 = vsub.f32 %v836, %v854
        %v885 = vsub.f32 %v837, %v856
        %v886 = vsub.f32 %v838, %v858
        %v887 = vsub.f32 %v839, %v860
        %v888 = vsub.f32 %v840, %v862
        %v889 = vsub.f32 %v841, %v864
        %v890 = vsub.f32 %v842, %v866
        %v891 = vsub.f32 %v843, %v868
        %v892 = vsub.f32 %v844, %v870
        %v893 = vsub.f32 %v845, %v872
        %v894 = vsub.f32 %v846, %v874
        %v895 = vsub.f32 %v847, %v876
        %v896 = vsub.f32 %v848, %v878
        %v897 = vsub.f32 %v849, %v880
        %v898 = vsub.f32 %v850, %v882
        %v899 = vmul.f32 %v883, 1.442695
        %v900 = vpow.pop %v899
        %v901 = vmul.f32 %v884, 1.442695
        %v902 = vpow.pop %v901
        %v903 = vmul.f32 %v885, 1.442695
        %v904 = vpow.pop %v903
        %v905 = vmul.f32 %v886, 1.442695
        %v906 = vpow.pop %v905
        %v907 = vmul.f32 %v887, 1.442695
        %v908 = vpow.pop %v907
        %v909 = vmul.f32 %v888, 1.442695
        %v910 = vpow.pop %v909
        %v911 = vmul.f32 %v889, 1.442695
        %v912 = vpow.pop %v911
        %v913 = vmul.f32 %v890, 1.442695
        %v914 = vpow.pop %v913
        %v915 = vmul.f32 %v891, 1.442695
        %v916 = vpow.pop %v915
        %v917 = vmul.f32 %v892, 1.442695
        %v918 = vpow.pop %v917
        %v919 = vmul.f32 %v893, 1.442695
        %v920 = vpow.pop %v919
        %v921 = vmul.f32 %v894, 1.442695
        %v922 = vpow.pop %v921
        %v923 = vmul.f32 %v895, 1.442695
        %v924 = vpow.pop %v923
        %v925 = vmul.f32 %v896, 1.442695
        %v926 = vpow.pop %v925
        %v927 = vmul.f32 %v897, 1.442695
        %v928 = vpow.pop %v927
        %v929 = vmul.f32 %v898, 1.442695
        %v930 = vpow.pop %v929
        %931 = vadd.xlane.f32.xlu0 %v900
        %v932 = vpop.xlane.xlu0 %931
        %933 = vadd.xlane.f32.xlu0 %v902
        %v934 = vpop.xlane.xlu0 %933
        %935 = vadd.xlane.f32.xlu0 %v904
        %v936 = vpop.xlane.xlu0 %935
        %937 = vadd.xlane.f32.xlu0 %v906
        %v938 = vpop.xlane.xlu0 %937
        %939 = vadd.xlane.f32.xlu0 %v908
        %v940 = vpop.xlane.xlu0 %939
        %941 = vadd.xlane.f32.xlu0 %v910
        %v942 = vpop.xlane.xlu0 %941
        %943 = vadd.xlane.f32.xlu0 %v912
        %v944 = vpop.xlane.xlu0 %943
        %945 = vadd.xlane.f32.xlu0 %v914
        %v946 = vpop.xlane.xlu0 %945
        %947 = vadd.xlane.f32.xlu0 %v916
        %v948 = vpop.xlane.xlu0 %947
        %949 = vadd.xlane.f32.xlu0 %v918
        %v950 = vpop.xlane.xlu0 %949
        %951 = vadd.xlane.f32.xlu0 %v920
        %v952 = vpop.xlane.xlu0 %951
        %953 = vadd.xlane.f32.xlu0 %v922
        %v954 = vpop.xlane.xlu0 %953
        %955 = vadd.xlane.f32.xlu0 %v924
        %v956 = vpop.xlane.xlu0 %955
        %957 = vadd.xlane.f32.xlu0 %v926
        %v958 = vpop.xlane.xlu0 %957
        %959 = vadd.xlane.f32.xlu0 %v928
        %v960 = vpop.xlane.xlu0 %959
        %961 = vadd.xlane.f32.xlu0 %v930
        %v962 = vpop.xlane.xlu0 %961
        %v963 = vrcp.pop %v932
        %v964 = vrcp.pop %v934
        %v965 = vrcp.pop %v936
        %v966 = vrcp.pop %v938
        %v967 = vrcp.pop %v940
        %v968 = vrcp.pop %v942
        %v969 = vrcp.pop %v944
        %v970 = vrcp.pop %v946
        %v971 = vrcp.pop %v948
        %v972 = vrcp.pop %v950
        %v973 = vrcp.pop %v952
        %v974 = vrcp.pop %v954
        %v975 = vrcp.pop %v956
        %v976 = vrcp.pop %v958
        %v977 = vrcp.pop %v960
        %v978 = vrcp.pop %v962
        %v979 = vmul.f32 %v900, %v963
        %v980 = vmul.f32 %v902, %v964
        %v981 = vmul.f32 %v904, %v965
        %v982 = vmul.f32 %v906, %v966
        %v983 = vmul.f32 %v908, %v967
        %v984 = vmul.f32 %v910, %v968
        %v985 = vmul.f32 %v912, %v969
        %v986 = vmul.f32 %v914, %v970
        %v987 = vmul.f32 %v916, %v971
        %v988 = vmul.f32 %v918, %v972
        %v989 = vmul.f32 %v920, %v973
        %v990 = vmul.f32 %v922, %v974
        %v991 = vmul.f32 %v924, %v975
        %v992 = vmul.f32 %v926, %v976
        %v993 = vmul.f32 %v928, %v977
        %v994 = vmul.f32 %v930, %v978
        %995 = vst [vmem:[%s216] sm:$0xff] %v979
        %996 = vst [vmem:[%s216 + $0x8] sm:$0xff] %v980
        %997 = vst [vmem:[%s216 + $0x10] sm:$0xff] %v981
        %998 = vst [vmem:[%s216 + $0x18] sm:$0xff] %v982
        %999 = vst [vmem:[%s216 + $0x20] sm:$0xff] %v983
        %1000 = vst [vmem:[%s216 + $0x28] sm:$0xff] %v984
        %1001 = vst [vmem:[%s216 + $0x30] sm:$0xff] %v985
        %1002 = vst [vmem:[%s216 + $0x38] sm:$0xff] %v986
        %1003 = vst [vmem:[%s216 + $0x40] sm:$0xff] %v987
        %1004 = vst [vmem:[%s216 + $0x48] sm:$0xff] %v988
        %1005 = vst [vmem:[%s216 + $0x50] sm:$0xff] %v989
        %1006 = vst [vmem:[%s216 + $0x58] sm:$0xff] %v990
        %1007 = vst [vmem:[%s216 + $0x60] sm:$0xff] %v991
        %1008 = vst [vmem:[%s216 + $0x68] sm:$0xff] %v992
        %1009 = vst [vmem:[%s216 + $0x70] sm:$0xff] %v993
        %1010 = vst [vmem:[%s216 + $0x78] sm:$0xff] %v994
        %s1011 = sand.u32 %s126, 1
        %s1012 = scalar_lea.sflag [#allocation4], %s1011
        %s1013 = sand.u32 %s126, 1
        %s1014 = smul.addr %s1013, 128
        %s1015 = scalar_lea.vmem [#allocation3], %s1014
        // Predicated region
        $region37: #{tpu_custom_call.1} parent=31 // pred_check
          %p1016 = pneg %p136
        $region38: #{tpu_custom_call.1} parent=31 // pred_check_branch
          %1018 = sbr.rel (%p1016) target = $region40
        $region39: #{tpu_custom_call.1} parent=31 // pred_region
          %s1019 = smul.u32 16, %s24
          %s1021 = ssub.s32 2048, 2048
          %1022 = vsyncadd %s1012, %s1021
          %s1023 = smul.addr %s23, 16
          %s1024 = sadd.s32 %s1019, %s1023
          %s1025 = smul.addr %s22, 64
          %s1026 = sadd.s32 %s1024, %s1025
          %s1027 = smul.addr %s1026, 128
          %s1028 = scalar_lea.hbm %s3, %s1027
          %s1029 = sshll.u32 %s1015, 4
          %s1030 = int_to_ptr.vmem [resolvable:$true] %s1029
          %1035 = dma.vmem_to_hbm [thread:$0]  %s1030, 2048, %s1028, %s1012, 128, 128, 8
        $region40: #{tpu_custom_call.1} parent=31 // pred_fallthru
          _
      $region32: #{tpu_custom_call.1} parent=5 // pred_fallthru
        _
      %p1036 = scmp.le.s32.totalorder 2, %s12
      // Predicated region
      $region41: #{tpu_custom_call.1} parent=5 // pred_check
        %p1037 = pneg %p1036
      $region42: #{tpu_custom_call.1} parent=5 // pred_check_branch
        %1039 = sbr.rel (%p1037) target = $region44
      $region43: #{tpu_custom_call.1} parent=5 // pred_region
        %s1040 = ssub.s32 %s12, 2
        // Predicated region
        $region45: #{tpu_custom_call.1} parent=43 // pred_check
          %p1041 = pneg %p142
        $region46: #{tpu_custom_call.1} parent=43 // pred_check_branch
          %1043 = sbr.rel (%p1041) target = $region48
        $region47: #{tpu_custom_call.1} parent=43 // pred_region
          %s1044 = sand.u32 %s127, 1
          %s1045 = scalar_lea.sflag [#allocation4], %s1044
          %s1046 = sand.u32 %s127, 1
          %s1047 = smul.addr %s1046, 128
          %s1048 = scalar_lea.vmem [#allocation3], %s1047
          %1049 = dma.done %s1045, 2048
        $region48: #{tpu_custom_call.1} parent=43 // pred_fallthru
          _
      $region44: #{tpu_custom_call.1} parent=5 // pred_fallthru
        _
    $region6: #{tpu_custom_call.1} parent=1 // loop_footer
      %s16 = sadd.s32 1, %s12
    $region7: #{tpu_custom_call.1} parent=1 // loop_footer_branch
      %11 = sbr.rel target = $region3
    $region8: #{tpu_custom_call.1} parent=1 // loop_exit
      _
    %1050 = vsyncpa [#allocation4], 1
    %s1051 = scalar_lea.sflag [#allocation4], 1
    %1052 = vsyncpa %s1051, 1

</llo_original>
